<compile_context>
chip_gen: v6e
topology: v6e:2x2x1
jax: 0.10.0
libtpu: 0.0.40
codegen_flags: <defaults>
</compile_context>

<pallas_src>
import functools

import jax
import jax.numpy as jnp
from jax.experimental import pallas as pl
from jax.experimental.pallas import tpu as pltpu


# ---------------------------------------------------------------------------
# Kernels: each grid step sees one lane-dense batch tile x_ref (tb, C).
# ---------------------------------------------------------------------------
def _mean_kernel(x_ref, p_ref, o_ref):
    # Group-sum (scale folded in) as an MXU matmul: (tb, C) @ (C, ncout).
    # HIGHEST precision keeps f32 pooling exact through the MXU; the op is HBM-bound,
    # so the extra MXU passes are free and the VPU/XLU stay idle.
    o_ref[...] = jnp.dot(
        x_ref[...].astype(jnp.float32),
        p_ref[...],
        preferred_element_type=jnp.float32,
        precision=jax.lax.Precision.HIGHEST,
    ).astype(o_ref.dtype)


def _max_kernel(x_ref, o_ref, *, ncout, kk):
    # Regroup in VMEM (not in HBM): slice the used columns, split the minor dim into
    # contiguous kk-wide channel groups, reduce.  Cheap vs. the HBM stream.
    x = x_ref[...]
    x = x[:, : ncout * kk].reshape(x.shape[0], ncout, kk)
    o_ref[...] = jnp.max(x, axis=-1).astype(o_ref.dtype)


# ---------------------------------------------------------------------------
# Tiling helpers
# ---------------------------------------------------------------------------
def _round_up(n, m):
    return ((n + m - 1) // m) * m


def _choose_batch_tile(B, C, itemsize):
    """Rows per grid step for a lane-dense (tb, C) input block."""
    sub = max(1, 32 // itemsize)                 # sublane multiple: 8 f32 / 16 bf16
    row_bytes = _round_up(C, 128) * itemsize     # padded VMEM bytes per row
    budget = 8 * 1024 * 1024                     # per input buffer (x2 double-buffer)
    tb = max(sub, (budget // row_bytes) // sub * sub)
    # Guarantee several grid steps when the batch is large enough: pipelined
    # DMA/compute overlap everywhere, and lets the "parallel" axis shard batch
    # tiles across v7x's two TensorCores.  Harmless on v5e/v6e (1 TC).
    if B >= 4 * sub:
        tb = min(tb, max(sub, (B // 4) // sub * sub))
    elif B >= 2 * sub:
        tb = min(tb, max(sub, (B // 2) // sub * sub))
    if tb >= B:
        return B
    return max(sub, (tb // sub) * sub)


# ---------------------------------------------------------------------------
# Wrapper (module-equivalent forward)
# ---------------------------------------------------------------------------
def pooling_linear(x, ncin, ncout, agg="mean", batch_tile=None):
    """Pallas implementation of PoolingLinear.forward.  x: (B, ncin) -> (B, ncout)."""
    B, C = x.shape
    assert C == ncin, f"expected ncin={ncin}, got {C}"

    if agg == "trunc":
        # Pure column slice: XLA's strided HBM copy at full bandwidth beats a Pallas
        # copy kernel here (no launch overhead, no extra column reads).
        return x[:, :ncout]

    k = float(ncin) / float(ncout)
    kk = int(k)  # floor, as in the PyTorch module

    itemsize = x.dtype.itemsize
    sub = max(1, 32 // itemsize)
    if batch_tile is None:
        tb = _choose_batch_tile(B, C, itemsize)
    else:
        tb = min(int(batch_tile), B)
        if tb < B:                               # keep blocks sublane-aligned
            tb = max(sub, (tb // sub) * sub)

    grid = (pl.cdiv(B, tb),)
    # Lane-dense 2-D input block over the ORIGINAL (B, C) layout: the last dim equals
    # the full array dim, so the DMA streams native (8,128) tiles at full occupancy.
    x_spec = pl.BlockSpec((tb, C), lambda i: (i, 0))
    out_spec = pl.BlockSpec((tb, ncout), lambda i: (i, 0))
    cparams = pltpu.CompilerParams(
        dimension_semantics=("parallel",),       # shard batch tiles across TCs (v7x)
        vmem_limit_bytes=32 * 1024 * 1024,       # > v5e's 16 MiB default, safe on v7x
    )

    if agg == "mean":
        scale = (k ** 0.5) / float(kk)           # sqrt(k) * mean == sum * sqrt(k)/kk
        # Pooling matrix P (C, ncout): P[i, c] = scale iff column i belongs to group c
        # (i // kk == c and i < ncout*kk); zero rows annihilate tail columns when
        # ncin % ncout != 0, so no wrapper-side slice (extra HBM pass) is needed.
        rows = jnp.arange(C, dtype=jnp.int32)[:, None]
        cols = jnp.arange(ncout, dtype=jnp.int32)[None, :]
        p = jnp.where((rows // kk == cols) & (rows < ncout * kk),
                      jnp.float32(scale), jnp.float32(0.0))
        return pl.pallas_call(
            _mean_kernel,
            grid=grid,
            in_specs=[x_spec,
                      # Tiny constant operand; same block index every step => resident.
                      pl.BlockSpec((C, ncout), lambda i: (0, 0))],
            out_specs=out_spec,
            out_shape=jax.ShapeDtypeStruct((B, ncout), x.dtype),
            compiler_params=cparams,
        )(x, p)

    if agg == "max":
        kern = functools.partial(_max_kernel, ncout=ncout, kk=kk)
        return pl.pallas_call(
            kern,
            grid=grid,
            in_specs=[x_spec],
            out_specs=out_spec,
            out_shape=jax.ShapeDtypeStruct((B, ncout), x.dtype),
            compiler_params=cparams,
        )(x)

    raise ValueError(f"unknown agg: {agg}")


# ---------------------------------------------------------------------------
# Pure-JAX reference (mirrors the PyTorch forward exactly)
# ---------------------------------------------------------------------------
def pooling_linear_ref(x, ncin, ncout, agg="mean"):
    if agg == "trunc":
        return x[:, :ncout]
    k = 1.0 * ncin / ncout
    out = x[:, : ncout * int(k)]
    out = out.reshape(x.shape[0], ncout, -1)
    if agg == "mean":
        return ((k ** 0.5) * out.mean(axis=2)).astype(x.dtype)
    elif agg == "max":
        return out.max(axis=2)
    raise ValueError(agg)


if __name__ == "__main__":
    # PoolingLinear has no learnable parameters; only deterministic inputs needed.
    key = jax.random.PRNGKey(0)
    ok = True
    # (B, ncin, ncout, batch_tile):
    #   - multi-step pipelined grid (explicit tile),
    #   - ncin % ncout != 0 (tail channels ignored via zero P rows / in-kernel slice),
    #   - ragged last batch tile (masked writeback).
    configs = [(64, 32, 8, 16), (24, 36, 8, None), (20, 32, 8, None)]
    for (B, ncin, ncout, batch_tile) in configs:
        key, subkey = jax.random.split(key)
        x = jax.random.normal(subkey, (B, ncin), dtype=jnp.float32)
        for agg in ("mean", "max", "trunc"):
            out = pooling_linear(x, ncin, ncout, agg=agg, batch_tile=batch_tile)
            out = jax.block_until_ready(out)
            ref = pooling_linear_ref(x, ncin, ncout, agg=agg)
            if out.shape != ref.shape or not jnp.allclose(out, ref, atol=1e-5, rtol=1e-5):
                ok = False
                print(f"MISMATCH for B={B} ncin={ncin} ncout={ncout} agg={agg}")
    if ok:
        print("KERNEL_OK")
</pallas_src>

<mosaic_0001>
module attributes {stable_mosaic.version = 11 : i64} {
  func.func @_mean_kernel(%arg0: i32, %arg1: memref<16x32xf32, #tpu.memory_space<vmem>>, %arg2: memref<32x8xf32, #tpu.memory_space<vmem>>, %arg3: memref<16x8xf32, #tpu.memory_space<vmem>>) attributes {dimension_semantics = [#tpu.dimension_semantics<parallel>], iteration_bounds = array<i64: 4>, scalar_prefetch = 0 : i64, scratch_operands = 0 : i64, tpu.core_type = #tpu.core_type<tc>, window_params = [{transform_indices = @transform_0, window_bounds = array<i64: 16, 32>}, {pipeline_mode = #tpu.pipeline_mode<synchronous>, transform_indices = @transform_1, window_bounds = array<i64: 32, 8>}, {transform_indices = @transform_2, window_bounds = array<i64: 16, 8>}]} {
    %c0 = arith.constant 0 : index
    %c0_0 = arith.constant 0 : index
    %0 = vector.load %arg1[%c0, %c0_0] : memref<16x32xf32, #tpu.memory_space<vmem>>, vector<16x32xf32>
    %c0_1 = arith.constant 0 : index
    %c0_2 = arith.constant 0 : index
    %1 = vector.load %arg2[%c0_1, %c0_2] : memref<32x8xf32, #tpu.memory_space<vmem>>, vector<32x8xf32>
    %cst = arith.constant dense<0.000000e+00> : vector<16x8xf32>
    %2 = tpu.matmul %0, %1, %cst {dimension_numbers = #tpu.dot_dimension_numbers<[1], [0], [0], [1], [0, 0, 1, 1], [], []>, precision = #tpu.contract_precision<fp32>} : vector<16x32xf32>, vector<32x8xf32>, vector<16x8xf32> -> vector<16x8xf32>
    %c0_3 = arith.constant 0 : index
    %c0_4 = arith.constant 0 : index
    %3 = vector.load %arg3[%c0_3, %c0_4] : memref<16x8xf32, #tpu.memory_space<vmem>>, vector<16x8xf32>
    tpu.vector_store %arg3[%c0_3, %c0_4], %2 {strides = array<i32>} : memref<16x8xf32, #tpu.memory_space<vmem>>, vector<16x8xf32>,
    return
  }
  func.func @transform_0(%arg0: i32) -> (i32, i32) {
    %c0_i32 = arith.constant 0 : i32
    %c0_i32_0 = arith.constant 0 : i32
    return %arg0, %c0_i32 : i32, i32
  }
  func.func @transform_1(%arg0: i32) -> (i32, i32) {
    %c0_i32 = arith.constant 0 : i32
    %c0_i32_0 = arith.constant 0 : i32
    %c0_i32_1 = arith.constant 0 : i32
    return %c0_i32, %c0_i32_0 : i32, i32
  }
  func.func @transform_2(%arg0: i32) -> (i32, i32) {
    %c0_i32 = arith.constant 0 : i32
    %c0_i32_0 = arith.constant 0 : i32
    return %arg0, %c0_i32 : i32, i32
  }
}

</mosaic_0001>

<llo_original>
// kernel: tpu_custom_call.1
$region0: #{tpu_custom_call.1}
  #allocation0 [shape = 'u32[]', space=smem, size = 0x4, offset = 0x4, fixed_abs, tag = 'smem constant byte address 0x4 - core index']
  #allocation1 [shape = 'u32[144,128]{1,0:T(1,128)}', space=vmem, size = 0x12000, scoped, tag = 'internal scratch']
  %s0 = inlined_call_operand.vmem [shape: f32[64,32], index: 0, kind: input, shape index: {}]
  %s1 = inlined_call_operand.vmem [shape: f32[32,8], index: 1, kind: input, shape index: {}]
  %s2 = inlined_call_operand.vmem [shape: f32[64,8], index: 2, kind: output, shape index: {}]
  %s3 = sld [smem:[#allocation0]]
  $region41: #{tpu_custom_call.1} parent=0
    _
  %s5 = ssub.s32 1, %s3
  %s6 = scalar_select 0, %s5, %s3
  loop: start=0, step=1, limit=6
  $region2: #{tpu_custom_call.1} parent=0 // loop_pre_header
    _
  $region3: #{tpu_custom_call.1} parent=0 // loop_header
    %s8 = sphi 0, %s12
    %p9 = scmp.ge.s32.totalorder %s8, 6
    %s18 = sphi 0, %s20
    %s21 = sphi 0, %s18
    %s22 = sphi 0, %s21
    %s38 = sphi 0, %s22
    %s42 = sphi 0, %s42
    %s44 = sphi 0, %s42
    %s45 = sphi 0, %s44
    %s59 = sphi 0, %s45
    %s65 = sphi 0, %s67
    %s68 = sphi 0, %s65
    %s69 = sphi 0, %s68
    %s85 = sphi 0, %s69
  $region4: #{tpu_custom_call.1} parent=0 // loop_header_branch
    %11 = sbr.rel (%p9) target = $region8
  $region5: #{tpu_custom_call.1} parent=0 // loop_body
    %s13 = ssub.s32 %s8, 1
    %s14 = ssub.s32 %s8, 2
    %s15 = sadd.s32 %s8, 1
    %s16 = ssub.s32 %s8, %s15
    %p17 = scmp.eq.s32.totalorder %s16, 0
    %s19 = sadd.s32 %s18, 1
    %s20 = scalar_select %p17, %s18, %s19
    %p23 = pneg %p17
    %p24 = scmp.eq.s32.totalorder %s8, 3
    %p25 = por %p23, %p24
    %p26 = scmp.ne.s32.totalorder %s18, %s21
    %p27 = scmp.eq.s32.totalorder %s8, 0
    %p28 = por %p26, %p27
    %p29 = scmp.ne.s32.totalorder %s18, %s21
    %p30 = scmp.eq.s32.totalorder %s13, 3
    %p31 = por %p29, %p30
    %p32 = scmp.ne.s32.totalorder %s21, %s22
    %p33 = scmp.eq.s32.totalorder %s13, 0
    %p34 = por %p32, %p33
    %p35 = scmp.ne.s32.totalorder %s21, %s22
    %p36 = scmp.eq.s32.totalorder %s14, 3
    %p37 = por %p35, %p36
    %p39 = scmp.ne.s32.totalorder %s22, %s38
    %p40 = scmp.eq.s32.totalorder %s14, 0
    %p41 = por %p39, %p40
    %s43 = sadd.s32 %s42, 1
    %p46 = scmp.eq.s32.totalorder %s8, 3
    %p47 = scmp.ne.s32.totalorder %s42, %s44
    %p48 = scmp.eq.s32.totalorder %s8, 0
    %p49 = por %p47, %p48
    %p50 = scmp.ne.s32.totalorder %s42, %s44
    %p51 = scmp.eq.s32.totalorder %s13, 3
    %p52 = por %p50, %p51
    %p53 = scmp.ne.s32.totalorder %s44, %s45
    %p54 = scmp.eq.s32.totalorder %s13, 0
    %p55 = por %p53, %p54
    %p56 = scmp.ne.s32.totalorder %s44, %s45
    %p57 = scmp.eq.s32.totalorder %s14, 3
    %p58 = por %p56, %p57
    %p60 = scmp.ne.s32.totalorder %s45, %s59
    %p61 = scmp.eq.s32.totalorder %s14, 0
    %p62 = por %p60, %p61
    %s63 = ssub.s32 %s8, %s15
    %p64 = scmp.eq.s32.totalorder %s63, 0
    %s66 = sadd.s32 %s65, 1
    %s67 = scalar_select %p64, %s65, %s66
    %p70 = pneg %p64
    %p71 = scmp.eq.s32.totalorder %s8, 3
    %p72 = por %p70, %p71
    %p73 = scmp.ne.s32.totalorder %s65, %s68
    %p74 = scmp.eq.s32.totalorder %s8, 0
    %p75 = por %p73, %p74
    %p76 = scmp.ne.s32.totalorder %s65, %s68
    %p77 = scmp.eq.s32.totalorder %s13, 3
    %p78 = por %p76, %p77
    %p79 = scmp.ne.s32.totalorder %s68, %s69
    %p80 = scmp.eq.s32.totalorder %s13, 0
    %p81 = por %p79, %p80
    %p82 = scmp.ne.s32.totalorder %s68, %s69
    %p83 = scmp.eq.s32.totalorder %s14, 3
    %p84 = por %p82, %p83
    %p86 = scmp.ne.s32.totalorder %s69, %s85
    %p87 = scmp.eq.s32.totalorder %s14, 0
    %p88 = por %p86, %p87
    %p89 = scmp.le.s32.totalorder 1, %s8
    %p90 = scmp.lt.s32.totalorder %s8, 5
    %p91 = pnand %p89, %p90
    %p92 = pneg %p91
    // Predicated region
    $region9: #{tpu_custom_call.1} parent=5 // pred_check
      _
    $region10: #{tpu_custom_call.1} parent=5 // pred_check_branch
      %94 = sbr.rel (%p91) target = $region12
    $region11: #{tpu_custom_call.1} parent=5 // pred_region
      %s95 = ssub.s32 %s8, 1
      // Predicated region
      $region13: #{tpu_custom_call.1} parent=11 // pred_check
        %p96 = pneg %p55
      $region14: #{tpu_custom_call.1} parent=11 // pred_check_branch
        %98 = sbr.rel (%p96) target = $region16
      $region15: #{tpu_custom_call.1} parent=11 // pred_region
        _
      $region16: #{tpu_custom_call.1} parent=11 // pred_fallthru
        _
    $region12: #{tpu_custom_call.1} parent=5 // pred_fallthru
      _
    %p99 = scmp.lt.s32.totalorder %s8, 4
    // Predicated region
    $region17: #{tpu_custom_call.1} parent=5 // pred_check
      %p100 = pneg %p99
    $region18: #{tpu_custom_call.1} parent=5 // pred_check_branch
      %102 = sbr.rel (%p100) target = $region20
    $region19: #{tpu_custom_call.1} parent=5 // pred_region
      // Predicated region
      $region21: #{tpu_custom_call.1} parent=19 // pred_check
        %p103 = pneg %p28
      $region22: #{tpu_custom_call.1} parent=19 // pred_check_branch
        %105 = sbr.rel (%p103) target = $region24
      $region23: #{tpu_custom_call.1} parent=19 // pred_region
        %s106 = smul.u32 2, %s8
        %p107 = scmp.lt.s32.totalorder %s106, 7
        %s108 = scalar_select %p107, %s106, 7
        %s109 = smul.addr %s108, 8
        %s110 = scalar_lea.vmem %s0, %s109
        %s111 = smul.u32 2, %s8
      $region24: #{tpu_custom_call.1} parent=19 // pred_fallthru
        _
    $region20: #{tpu_custom_call.1} parent=5 // pred_fallthru
      _
    %p112 = scmp.le.s32.totalorder 1, %s8
    %p113 = scmp.lt.s32.totalorder %s8, 5
    %p114 = pnand %p112, %p113
    %p115 = pneg %p114
    // Predicated region
    $region25: #{tpu_custom_call.1} parent=5 // pred_check
      _
    $region26: #{tpu_custom_call.1} parent=5 // pred_check_branch
      %117 = sbr.rel (%p114) target = $region28
    $region27: #{tpu_custom_call.1} parent=5 // pred_region
      %s118 = ssub.s32 %s8, 1
      %s119 = smul.u32 2, %s13
      %p120 = scmp.lt.s32.totalorder %s119, 7
      %s121 = scalar_select %p120, %s119, 7
      %s122 = smul.addr %s121, 8
      %s123 = scalar_lea.vmem %s0, %s122
      %p124 = pneg %p34
      %p125 = pneg %p31
      %p126 = pneg %p55
      %p127 = pneg %p52
      %p128 = pneg %p81
      %p129 = pneg %p78
      %s130 = smul.u32 2, %s13
      %p131 = scmp.lt.s32.totalorder %s130, 7
      %s132 = scalar_select %p131, %s130, 7
      %s133 = smul.addr %s132, 8
      %s134 = scalar_lea.vmem %s2, %s133
      %s135 = smul.u32 2, %s13
      %p136 = scmp.lt.s32.totalorder %s135, 7
      %s137 = scalar_select %p136, %s135, 7
      %s138 = smul.addr %s137, 8
      %s139 = scalar_lea.vmem %s0, %s138
      %s140 = smul.u32 2, %s13
      %s141 = smul.u32 2, %s13
      %p142 = scmp.lt.s32.totalorder %s141, 7
      %s143 = scalar_select %p142, %s141, 7
      %s144 = smul.addr %s143, 8
      %s145 = scalar_lea.vmem %s2, %s144
      %s146 = smul.u32 2, %s13
      %v147 = vld [vmem:[%s139] sm:$0xff]
      %v148 = vld [vmem:[%s139 + $0x8] sm:$0xff]
      %v149 = vld [vmem:[%s1] sm:$0xff]
      %v150 = vld [vmem:[%s1 + $0x8] sm:$0xff]
      %v151 = vld [vmem:[%s1 + $0x10] sm:$0xff]
      %v152 = vld [vmem:[%s1 + $0x18] sm:$0xff]
      %vm153 = vcmask 261120
      %v155 = vsel %vm153, %v147, 0
      %v158 = vsel %vm153, %v148, 0
      %160 = vmatprep.subr.mxu0 0.0
      %161 = vmatpush1.msra.mxu0 0.0
      %162 = vmatprep.subr.mxu0 0.0
      %163 = vmatpush1.msra.mxu0 0.0
      %164 = vmatprep.subr.mxu0 0.0
      %165 = vmatpush1.msra.mxu0 0.0
      %166 = vmatprep.subr.mxu0 0.0
      %167 = vmatpush1.msra.mxu0 0.0
      %168 = vmatprep.subr.mxu0 0.0
      %169 = vmatpush1.msra.mxu0 0.0
      %170 = vmatprep.subr.mxu0 0.0
      %171 = vmatpush1.msra.mxu0 0.0
      %172 = vmatprep.subr.mxu0 0.0
      %173 = vmatpush1.msra.mxu0 0.0
      %174 = vmatprep.subr.mxu0 0.0
      %175 = vmatpush1.msra.mxu0 0.0
      %176 = vmatprep.subr.mxu0 0.0
      %177 = vmatpush1.msra.mxu0 0.0
      %178 = vmatprep.subr.mxu0 0.0
      %179 = vmatpush1.msra.mxu0 0.0
      %180 = vmatprep.subr.mxu0 0.0
      %181 = vmatpush1.msra.mxu0 0.0
      %182 = vmatprep.subr.mxu0 0.0
      %183 = vmatpush1.msra.mxu0 0.0
      %184 = vmatprep.subr.mxu0 0.0
      %v185 = vand.u32 %v152, 4294901760
      %186 = vmatpush1.msra.mxu0 %v185
      %187 = vmatprep.subr.mxu0 0.0
      %v188 = vand.u32 %v151, 4294901760
      %189 = vmatpush1.msra.mxu0 %v188
      %190 = vmatprep.subr.mxu0 0.0
      %v191 = vand.u32 %v150, 4294901760
      %192 = vmatpush1.msra.mxu0 %v191
      %193 = vmatprep.subr.mxu0 0.0
      %v194 = vand.u32 %v149, 4294901760
      %195 = vmatpush1.msra.mxu0 %v194
      %196 = vmatprep.subr.mxu0 0.0
      %197 = vmatpush2.msra.mxu0 0.0
      %198 = vmatprep.subr.mxu0 0.0
      %199 = vmatpush2.msra.mxu0 0.0
      %200 = vmatprep.subr.mxu0 0.0
      %201 = vmatpush2.msra.mxu0 0.0
      %202 = vmatprep.subr.mxu0 0.0
      %203 = vmatpush2.msra.mxu0 0.0
      %204 = vmatprep.subr.mxu0 0.0
      %205 = vmatpush2.msra.mxu0 0.0
      %206 = vmatprep.subr.mxu0 0.0
      %207 = vmatpush2.msra.mxu0 0.0
      %208 = vmatprep.subr.mxu0 0.0
      %209 = vmatpush2.msra.mxu0 0.0
      %210 = vmatprep.subr.mxu0 0.0
      %211 = vmatpush2.msra.mxu0 0.0
      %212 = vmatprep.subr.mxu0 0.0
      %213 = vmatpush2.msra.mxu0 0.0
      %214 = vmatprep.subr.mxu0 0.0
      %215 = vmatpush2.msra.mxu0 0.0
      %216 = vmatprep.subr.mxu0 0.0
      %217 = vmatpush2.msra.mxu0 0.0
      %218 = vmatprep.subr.mxu0 0.0
      %219 = vmatpush2.msra.mxu0 0.0
      %220 = vmatprep.subr.mxu0 0.0
      %221 = vmatpush2.msra.mxu0 0.0
      %222 = vmatprep.subr.mxu0 0.0
      %223 = vmatpush2.msra.mxu0 0.0
      %224 = vmatprep.subr.mxu0 0.0
      %225 = vmatpush2.msra.mxu0 0.0
      %226 = vmatprep.subr.mxu0 0.0
      %227 = vmatpush2.msra.mxu0 0.0
      %228 = vmatprep.mubr.f32.mxu0 0.0
      %v229 = vand.u32 %v155, 4294901760
      %v230 = vsub.f32 %v155, %v229
      %v231 = vand.u32 %v230, 4294901760
      %v232 = vsub.f32 %v230, %v231
      %v233 = vand.u32 %v232, 4294901760
      %234 = vmatmul.mubr.f32.gmra.mxu0 %v233
      %v235 = vpop.f32.mrf.mxu0
      %v236 = vadd.f32 0.0, %v235
      %v237 = vpop.f32.mrf.mxu0
      %238 = vmatprep.mubr.f32.mxu0 0.0
      %v239 = vand.u32 %v158, 4294901760
      %v240 = vsub.f32 %v158, %v239
      %v241 = vand.u32 %v240, 4294901760
      %v242 = vsub.f32 %v240, %v241
      %v243 = vand.u32 %v242, 4294901760
      %244 = vmatmul.mubr.f32.gmra.mxu0 %v243
      %v245 = vpop.f32.mrf.mxu0
      %v246 = vadd.f32 0.0, %v245
      %v247 = vpop.f32.mrf.mxu0
      %248 = vdwg.mxu0
      %249 = vmatprep.subr.mxu0 0.0
      %250 = vmatpush1.msra.mxu0 0.0
      %251 = vmatprep.subr.mxu0 0.0
      %252 = vmatpush1.msra.mxu0 0.0
      %253 = vmatprep.subr.mxu0 0.0
      %254 = vmatpush1.msra.mxu0 0.0
      %255 = vmatprep.subr.mxu0 0.0
      %256 = vmatpush1.msra.mxu0 0.0
      %257 = vmatprep.subr.mxu0 0.0
      %258 = vmatpush1.msra.mxu0 0.0
      %259 = vmatprep.subr.mxu0 0.0
      %260 = vmatpush1.msra.mxu0 0.0
      %261 = vmatprep.subr.mxu0 0.0
      %262 = vmatpush1.msra.mxu0 0.0
      %263 = vmatprep.subr.mxu0 0.0
      %264 = vmatpush1.msra.mxu0 0.0
      %265 = vmatprep.subr.mxu0 0.0
      %266 = vmatpush1.msra.mxu0 0.0
      %267 = vmatprep.subr.mxu0 0.0
      %268 = vmatpush1.msra.mxu0 0.0
      %269 = vmatprep.subr.mxu0 0.0
      %270 = vmatpush1.msra.mxu0 0.0
      %271 = vmatprep.subr.mxu0 0.0
      %272 = vmatpush1.msra.mxu0 0.0
      %273 = vmatprep.subr.mxu0 0.0
      %v274 = vand.u32 %v152, 4294901760
      %v275 = vsub.f32 %v152, %v274
      %v276 = vand.u32 %v275, 4294901760
      %v277 = vsub.f32 %v275, %v276
      %v278 = vand.u32 %v277, 4294901760
      %279 = vmatpush1.msra.mxu0 %v278
      %280 = vmatprep.subr.mxu0 0.0
      %v281 = vand.u32 %v151, 4294901760
      %v282 = vsub.f32 %v151, %v281
      %v283 = vand.u32 %v282, 4294901760
      %v284 = vsub.f32 %v282, %v283
      %v285 = vand.u32 %v284, 4294901760
      %286 = vmatpush1.msra.mxu0 %v285
      %287 = vmatprep.subr.mxu0 0.0
      %v288 = vand.u32 %v150, 4294901760
      %v289 = vsub.f32 %v150, %v288
      %v290 = vand.u32 %v289, 4294901760
      %v291 = vsub.f32 %v289, %v290
      %v292 = vand.u32 %v291, 4294901760
      %293 = vmatpush1.msra.mxu0 %v292
      %294 = vmatprep.subr.mxu0 0.0
      %v295 = vand.u32 %v149, 4294901760
      %v296 = vsub.f32 %v149, %v295
      %v297 = vand.u32 %v296, 4294901760
      %v298 = vsub.f32 %v296, %v297
      %v299 = vand.u32 %v298, 4294901760
      %300 = vmatpush1.msra.mxu0 %v299
      %301 = vmatprep.subr.mxu0 0.0
      %302 = vmatpush2.msra.mxu0 0.0
      %303 = vmatprep.subr.mxu0 0.0
      %304 = vmatpush2.msra.mxu0 0.0
      %305 = vmatprep.subr.mxu0 0.0
      %306 = vmatpush2.msra.mxu0 0.0
      %307 = vmatprep.subr.mxu0 0.0
      %308 = vmatpush2.msra.mxu0 0.0
      %309 = vmatprep.subr.mxu0 0.0
      %310 = vmatpush2.msra.mxu0 0.0
      %311 = vmatprep.subr.mxu0 0.0
      %312 = vmatpush2.msra.mxu0 0.0
      %313 = vmatprep.subr.mxu0 0.0
      %314 = vmatpush2.msra.mxu0 0.0
      %315 = vmatprep.subr.mxu0 0.0
      %316 = vmatpush2.msra.mxu0 0.0
      %317 = vmatprep.subr.mxu0 0.0
      %318 = vmatpush2.msra.mxu0 0.0
      %319 = vmatprep.subr.mxu0 0.0
      %320 = vmatpush2.msra.mxu0 0.0
      %321 = vmatprep.subr.mxu0 0.0
      %322 = vmatpush2.msra.mxu0 0.0
      %323 = vmatprep.subr.mxu0 0.0
      %324 = vmatpush2.msra.mxu0 0.0
      %325 = vmatprep.subr.mxu0 0.0
      %326 = vmatpush2.msra.mxu0 0.0
      %327 = vmatprep.subr.mxu0 0.0
      %328 = vmatpush2.msra.mxu0 0.0
      %329 = vmatprep.subr.mxu0 0.0
      %330 = vmatpush2.msra.mxu0 0.0
      %331 = vmatprep.subr.mxu0 0.0
      %332 = vmatpush2.msra.mxu0 0.0
      %333 = vmatprep.mubr.f32.mxu0 0.0
      %v334 = vand.u32 %v155, 4294901760
      %335 = vmatmul.mubr.f32.gmra.mxu0 %v334
      %v336 = vpop.f32.mrf.mxu0
      %v337 = vadd.f32 %v236, %v336
      %v338 = vpop.f32.mrf.mxu0
      %339 = vmatprep.mubr.f32.mxu0 0.0
      %v340 = vand.u32 %v158, 4294901760
      %341 = vmatmul.mubr.f32.gmra.mxu0 %v340
      %v342 = vpop.f32.mrf.mxu0
      %v343 = vadd.f32 %v246, %v342
      %v344 = vpop.f32.mrf.mxu0
      %345 = vdwg.mxu0
      %346 = vmatprep.subr.mxu0 0.0
      %347 = vmatpush1.msra.mxu0 0.0
      %348 = vmatprep.subr.mxu0 0.0
      %349 = vmatpush1.msra.mxu0 0.0
      %350 = vmatprep.subr.mxu0 0.0
      %351 = vmatpush1.msra.mxu0 0.0
      %352 = vmatprep.subr.mxu0 0.0
      %353 = vmatpush1.msra.mxu0 0.0
      %354 = vmatprep.subr.mxu0 0.0
      %355 = vmatpush1.msra.mxu0 0.0
      %356 = vmatprep.subr.mxu0 0.0
      %357 = vmatpush1.msra.mxu0 0.0
      %358 = vmatprep.subr.mxu0 0.0
      %359 = vmatpush1.msra.mxu0 0.0
      %360 = vmatprep.subr.mxu0 0.0
      %361 = vmatpush1.msra.mxu0 0.0
      %362 = vmatprep.subr.mxu0 0.0
      %363 = vmatpush1.msra.mxu0 0.0
      %364 = vmatprep.subr.mxu0 0.0
      %365 = vmatpush1.msra.mxu0 0.0
      %366 = vmatprep.subr.mxu0 0.0
      %367 = vmatpush1.msra.mxu0 0.0
      %368 = vmatprep.subr.mxu0 0.0
      %369 = vmatpush1.msra.mxu0 0.0
      %370 = vmatprep.subr.mxu0 0.0
      %v371 = vand.u32 %v152, 4294901760
      %v372 = vsub.f32 %v152, %v371
      %373 = vmatpush1.msra.mxu0 %v372
      %374 = vmatprep.subr.mxu0 0.0
      %v375 = vand.u32 %v151, 4294901760
      %v376 = vsub.f32 %v151, %v375
      %377 = vmatpush1.msra.mxu0 %v376
      %378 = vmatprep.subr.mxu0 0.0
      %v379 = vand.u32 %v150, 4294901760
      %v380 = vsub.f32 %v150, %v379
      %381 = vmatpush1.msra.mxu0 %v380
      %382 = vmatprep.subr.mxu0 0.0
      %v383 = vand.u32 %v149, 4294901760
      %v384 = vsub.f32 %v149, %v383
      %385 = vmatpush1.msra.mxu0 %v384
      %386 = vmatprep.subr.mxu0 0.0
      %387 = vmatpush2.msra.mxu0 0.0
      %388 = vmatprep.subr.mxu0 0.0
      %389 = vmatpush2.msra.mxu0 0.0
      %390 = vmatprep.subr.mxu0 0.0
      %391 = vmatpush2.msra.mxu0 0.0
      %392 = vmatprep.subr.mxu0 0.0
      %393 = vmatpush2.msra.mxu0 0.0
      %394 = vmatprep.subr.mxu0 0.0
      %395 = vmatpush2.msra.mxu0 0.0
      %396 = vmatprep.subr.mxu0 0.0
      %397 = vmatpush2.msra.mxu0 0.0
      %398 = vmatprep.subr.mxu0 0.0
      %399 = vmatpush2.msra.mxu0 0.0
      %400 = vmatprep.subr.mxu0 0.0
      %401 = vmatpush2.msra.mxu0 0.0
      %402 = vmatprep.subr.mxu0 0.0
      %403 = vmatpush2.msra.mxu0 0.0
      %404 = vmatprep.subr.mxu0 0.0
      %405 = vmatpush2.msra.mxu0 0.0
      %406 = vmatprep.subr.mxu0 0.0
      %407 = vmatpush2.msra.mxu0 0.0
      %408 = vmatprep.subr.mxu0 0.0
      %409 = vmatpush2.msra.mxu0 0.0
      %410 = vmatprep.subr.mxu0 0.0
      %411 = vmatpush2.msra.mxu0 0.0
      %412 = vmatprep.subr.mxu0 0.0
      %413 = vmatpush2.msra.mxu0 0.0
      %414 = vmatprep.subr.mxu0 0.0
      %415 = vmatpush2.msra.mxu0 0.0
      %416 = vmatprep.subr.mxu0 0.0
      %417 = vmatpush2.msra.mxu0 0.0
      %418 = vmatprep.mubr.f32.mxu0 0.0
      %v419 = vand.u32 %v155, 4294901760
      %v420 = vsub.f32 %v155, %v419
      %421 = vmatmul.mubr.f32.gmra.mxu0 %v420
      %v422 = vpop.f32.mrf.mxu0
      %v423 = vadd.f32 %v337, %v422
      %v424 = vpop.f32.mrf.mxu0
      %425 = vmatprep.mubr.f32.mxu0 0.0
      %v426 = vand.u32 %v158, 4294901760
      %v427 = vsub.f32 %v158, %v426
      %428 = vmatmul.mubr.f32.gmra.mxu0 %v427
      %v429 = vpop.f32.mrf.mxu0
      %v430 = vadd.f32 %v343, %v429
      %v431 = vpop.f32.mrf.mxu0
      %432 = vdwg.mxu0
      %433 = vmatprep.subr.mxu0 0.0
      %434 = vmatpush1.msra.mxu0 0.0
      %435 = vmatprep.subr.mxu0 0.0
      %436 = vmatpush1.msra.mxu0 0.0
      %437 = vmatprep.subr.mxu0 0.0
      %438 = vmatpush1.msra.mxu0 0.0
      %439 = vmatprep.subr.mxu0 0.0
      %440 = vmatpush1.msra.mxu0 0.0
      %441 = vmatprep.subr.mxu0 0.0
      %442 = vmatpush1.msra.mxu0 0.0
      %443 = vmatprep.subr.mxu0 0.0
      %444 = vmatpush1.msra.mxu0 0.0
      %445 = vmatprep.subr.mxu0 0.0
      %446 = vmatpush1.msra.mxu0 0.0
      %447 = vmatprep.subr.mxu0 0.0
      %448 = vmatpush1.msra.mxu0 0.0
      %449 = vmatprep.subr.mxu0 0.0
      %450 = vmatpush1.msra.mxu0 0.0
      %451 = vmatprep.subr.mxu0 0.0
      %452 = vmatpush1.msra.mxu0 0.0
      %453 = vmatprep.subr.mxu0 0.0
      %454 = vmatpush1.msra.mxu0 0.0
      %455 = vmatprep.subr.mxu0 0.0
      %456 = vmatpush1.msra.mxu0 0.0
      %457 = vmatprep.subr.mxu0 0.0
      %v458 = vand.u32 %v152, 4294901760
      %459 = vmatpush1.msra.mxu0 %v458
      %460 = vmatprep.subr.mxu0 0.0
      %v461 = vand.u32 %v151, 4294901760
      %462 = vmatpush1.msra.mxu0 %v461
      %463 = vmatprep.subr.mxu0 0.0
      %v464 = vand.u32 %v150, 4294901760
      %465 = vmatpush1.msra.mxu0 %v464
      %466 = vmatprep.subr.mxu0 0.0
      %v467 = vand.u32 %v149, 4294901760
      %468 = vmatpush1.msra.mxu0 %v467
      %469 = vmatprep.subr.mxu0 0.0
      %470 = vmatpush2.msra.mxu0 0.0
      %471 = vmatprep.subr.mxu0 0.0
      %472 = vmatpush2.msra.mxu0 0.0
      %473 = vmatprep.subr.mxu0 0.0
      %474 = vmatpush2.msra.mxu0 0.0
      %475 = vmatprep.subr.mxu0 0.0
      %476 = vmatpush2.msra.mxu0 0.0
      %477 = vmatprep.subr.mxu0 0.0
      %478 = vmatpush2.msra.mxu0 0.0
      %479 = vmatprep.subr.mxu0 0.0
      %480 = vmatpush2.msra.mxu0 0.0
      %481 = vmatprep.subr.mxu0 0.0
      %482 = vmatpush2.msra.mxu0 0.0
      %483 = vmatprep.subr.mxu0 0.0
      %484 = vmatpush2.msra.mxu0 0.0
      %485 = vmatprep.subr.mxu0 0.0
      %486 = vmatpush2.msra.mxu0 0.0
      %487 = vmatprep.subr.mxu0 0.0
      %488 = vmatpush2.msra.mxu0 0.0
      %489 = vmatprep.subr.mxu0 0.0
      %490 = vmatpush2.msra.mxu0 0.0
      %491 = vmatprep.subr.mxu0 0.0
      %492 = vmatpush2.msra.mxu0 0.0
      %493 = vmatprep.subr.mxu0 0.0
      %494 = vmatpush2.msra.mxu0 0.0
      %495 = vmatprep.subr.mxu0 0.0
      %496 = vmatpush2.msra.mxu0 0.0
      %497 = vmatprep.subr.mxu0 0.0
      %498 = vmatpush2.msra.mxu0 0.0
      %499 = vmatprep.subr.mxu0 0.0
      %500 = vmatpush2.msra.mxu0 0.0
      %501 = vmatprep.mubr.f32.mxu0 0.0
      %v502 = vand.u32 %v155, 4294901760
      %v503 = vsub.f32 %v155, %v502
      %v504 = vand.u32 %v503, 4294901760
      %505 = vmatmul.mubr.f32.gmra.mxu0 %v504
      %v506 = vpop.f32.mrf.mxu0
      %v507 = vadd.f32 %v423, %v506
      %v508 = vpop.f32.mrf.mxu0
      %509 = vmatprep.mubr.f32.mxu0 0.0
      %v510 = vand.u32 %v158, 4294901760
      %v511 = vsub.f32 %v158, %v510
      %v512 = vand.u32 %v511, 4294901760
      %513 = vmatmul.mubr.f32.gmra.mxu0 %v512
      %v514 = vpop.f32.mrf.mxu0
      %v515 = vadd.f32 %v430, %v514
      %v516 = vpop.f32.mrf.mxu0
      %517 = vdwg.mxu0
      %518 = vmatprep.subr.mxu0 0.0
      %519 = vmatpush1.msra.mxu0 0.0
      %520 = vmatprep.subr.mxu0 0.0
      %521 = vmatpush1.msra.mxu0 0.0
      %522 = vmatprep.subr.mxu0 0.0
      %523 = vmatpush1.msra.mxu0 0.0
      %524 = vmatprep.subr.mxu0 0.0
      %525 = vmatpush1.msra.mxu0 0.0
      %526 = vmatprep.subr.mxu0 0.0
      %527 = vmatpush1.msra.mxu0 0.0
      %528 = vmatprep.subr.mxu0 0.0
      %529 = vmatpush1.msra.mxu0 0.0
      %530 = vmatprep.subr.mxu0 0.0
      %531 = vmatpush1.msra.mxu0 0.0
      %532 = vmatprep.subr.mxu0 0.0
      %533 = vmatpush1.msra.mxu0 0.0
      %534 = vmatprep.subr.mxu0 0.0
      %535 = vmatpush1.msra.mxu0 0.0
      %536 = vmatprep.subr.mxu0 0.0
      %537 = vmatpush1.msra.mxu0 0.0
      %538 = vmatprep.subr.mxu0 0.0
      %539 = vmatpush1.msra.mxu0 0.0
      %540 = vmatprep.subr.mxu0 0.0
      %541 = vmatpush1.msra.mxu0 0.0
      %542 = vmatprep.subr.mxu0 0.0
      %v543 = vand.u32 %v152, 4294901760
      %v544 = vsub.f32 %v152, %v543
      %v545 = vand.u32 %v544, 4294901760
      %546 = vmatpush1.msra.mxu0 %v545
      %547 = vmatprep.subr.mxu0 0.0
      %v548 = vand.u32 %v151, 4294901760
      %v549 = vsub.f32 %v151, %v548
      %v550 = vand.u32 %v549, 4294901760
      %551 = vmatpush1.msra.mxu0 %v550
      %552 = vmatprep.subr.mxu0 0.0
      %v553 = vand.u32 %v150, 4294901760
      %v554 = vsub.f32 %v150, %v553
      %v555 = vand.u32 %v554, 4294901760
      %556 = vmatpush1.msra.mxu0 %v555
      %557 = vmatprep.subr.mxu0 0.0
      %v558 = vand.u32 %v149, 4294901760
      %v559 = vsub.f32 %v149, %v558
      %v560 = vand.u32 %v559, 4294901760
      %561 = vmatpush1.msra.mxu0 %v560
      %562 = vmatprep.subr.mxu0 0.0
      %563 = vmatpush2.msra.mxu0 0.0
      %564 = vmatprep.subr.mxu0 0.0
      %565 = vmatpush2.msra.mxu0 0.0
      %566 = vmatprep.subr.mxu0 0.0
      %567 = vmatpush2.msra.mxu0 0.0
      %568 = vmatprep.subr.mxu0 0.0
      %569 = vmatpush2.msra.mxu0 0.0
      %570 = vmatprep.subr.mxu0 0.0
      %571 = vmatpush2.msra.mxu0 0.0
      %572 = vmatprep.subr.mxu0 0.0
      %573 = vmatpush2.msra.mxu0 0.0
      %574 = vmatprep.subr.mxu0 0.0
      %575 = vmatpush2.msra.mxu0 0.0
      %576 = vmatprep.subr.mxu0 0.0
      %577 = vmatpush2.msra.mxu0 0.0
      %578 = vmatprep.subr.mxu0 0.0
      %579 = vmatpush2.msra.mxu0 0.0
      %580 = vmatprep.subr.mxu0 0.0
      %581 = vmatpush2.msra.mxu0 0.0
      %582 = vmatprep.subr.mxu0 0.0
      %583 = vmatpush2.msra.mxu0 0.0
      %584 = vmatprep.subr.mxu0 0.0
      %585 = vmatpush2.msra.mxu0 0.0
      %586 = vmatprep.subr.mxu0 0.0
      %587 = vmatpush2.msra.mxu0 0.0
      %588 = vmatprep.subr.mxu0 0.0
      %589 = vmatpush2.msra.mxu0 0.0
      %590 = vmatprep.subr.mxu0 0.0
      %591 = vmatpush2.msra.mxu0 0.0
      %592 = vmatprep.subr.mxu0 0.0
      %593 = vmatpush2.msra.mxu0 0.0
      %594 = vmatprep.mubr.f32.mxu0 0.0
      %v595 = vand.u32 %v155, 4294901760
      %596 = vmatmul.mubr.f32.gmra.mxu0 %v595
      %v597 = vpop.f32.mrf.mxu0
      %v598 = vadd.f32 %v507, %v597
      %v599 = vpop.f32.mrf.mxu0
      %600 = vmatprep.mubr.f32.mxu0 0.0
      %v601 = vand.u32 %v158, 4294901760
      %602 = vmatmul.mubr.f32.gmra.mxu0 %v601
      %v603 = vpop.f32.mrf.mxu0
      %v604 = vadd.f32 %v515, %v603
      %v605 = vpop.f32.mrf.mxu0
      %606 = vdwg.mxu0
      %607 = vmatprep.subr.mxu0 0.0
      %608 = vmatpush1.msra.mxu0 0.0
      %609 = vmatprep.subr.mxu0 0.0
      %610 = vmatpush1.msra.mxu0 0.0
      %611 = vmatprep.subr.mxu0 0.0
      %612 = vmatpush1.msra.mxu0 0.0
      %613 = vmatprep.subr.mxu0 0.0
      %614 = vmatpush1.msra.mxu0 0.0
      %615 = vmatprep.subr.mxu0 0.0
      %616 = vmatpush1.msra.mxu0 0.0
      %617 = vmatprep.subr.mxu0 0.0
      %618 = vmatpush1.msra.mxu0 0.0
      %619 = vmatprep.subr.mxu0 0.0
      %620 = vmatpush1.msra.mxu0 0.0
      %621 = vmatprep.subr.mxu0 0.0
      %622 = vmatpush1.msra.mxu0 0.0
      %623 = vmatprep.subr.mxu0 0.0
      %624 = vmatpush1.msra.mxu0 0.0
      %625 = vmatprep.subr.mxu0 0.0
      %626 = vmatpush1.msra.mxu0 0.0
      %627 = vmatprep.subr.mxu0 0.0
      %628 = vmatpush1.msra.mxu0 0.0
      %629 = vmatprep.subr.mxu0 0.0
      %630 = vmatpush1.msra.mxu0 0.0
      %631 = vmatprep.subr.mxu0 0.0
      %v632 = vand.u32 %v152, 4294901760
      %633 = vmatpush1.msra.mxu0 %v632
      %634 = vmatprep.subr.mxu0 0.0
      %v635 = vand.u32 %v151, 4294901760
      %636 = vmatpush1.msra.mxu0 %v635
      %637 = vmatprep.subr.mxu0 0.0
      %v638 = vand.u32 %v150, 4294901760
      %639 = vmatpush1.msra.mxu0 %v638
      %640 = vmatprep.subr.mxu0 0.0
      %v641 = vand.u32 %v149, 4294901760
      %642 = vmatpush1.msra.mxu0 %v641
      %643 = vmatprep.subr.mxu0 0.0
      %644 = vmatpush2.msra.mxu0 0.0
      %645 = vmatprep.subr.mxu0 0.0
      %646 = vmatpush2.msra.mxu0 0.0
      %647 = vmatprep.subr.mxu0 0.0
      %648 = vmatpush2.msra.mxu0 0.0
      %649 = vmatprep.subr.mxu0 0.0
      %650 = vmatpush2.msra.mxu0 0.0
      %651 = vmatprep.subr.mxu0 0.0
      %652 = vmatpush2.msra.mxu0 0.0
      %653 = vmatprep.subr.mxu0 0.0
      %654 = vmatpush2.msra.mxu0 0.0
      %655 = vmatprep.subr.mxu0 0.0
      %656 = vmatpush2.msra.mxu0 0.0
      %657 = vmatprep.subr.mxu0 0.0
      %658 = vmatpush2.msra.mxu0 0.0
      %659 = vmatprep.subr.mxu0 0.0
      %660 = vmatpush2.msra.mxu0 0.0
      %661 = vmatprep.subr.mxu0 0.0
      %662 = vmatpush2.msra.mxu0 0.0
      %663 = vmatprep.subr.mxu0 0.0
      %664 = vmatpush2.msra.mxu0 0.0
      %665 = vmatprep.subr.mxu0 0.0
      %666 = vmatpush2.msra.mxu0 0.0
      %667 = vmatprep.subr.mxu0 0.0
      %668 = vmatpush2.msra.mxu0 0.0
      %669 = vmatprep.subr.mxu0 0.0
      %670 = vmatpush2.msra.mxu0 0.0
      %671 = vmatprep.subr.mxu0 0.0
      %672 = vmatpush2.msra.mxu0 0.0
      %673 = vmatprep.subr.mxu0 0.0
      %674 = vmatpush2.msra.mxu0 0.0
      %675 = vmatprep.mubr.f32.mxu0 0.0
      %v676 = vand.u32 %v155, 4294901760
      %677 = vmatmul.mubr.f32.gmra.mxu0 %v676
      %v678 = vpop.f32.mrf.mxu0
      %v679 = vadd.f32 %v598, %v678
      %v680 = vpop.f32.mrf.mxu0
      %681 = vmatprep.mubr.f32.mxu0 0.0
      %v682 = vand.u32 %v158, 4294901760
      %683 = vmatmul.mubr.f32.gmra.mxu0 %v682
      %v684 = vpop.f32.mrf.mxu0
      %v685 = vadd.f32 %v604, %v684
      %v686 = vpop.f32.mrf.mxu0
      %687 = vdwg.mxu0
      %vm688 = vcmask 64512
      %689 = vst.msk [vmem:[%s145] sm:$0xff] %vm688, %v679
      %690 = vst.msk [vmem:[%s145 + $0x8] sm:$0xff] %vm688, %v685
      %s691 = smul.u32 2, %s13
      %p692 = scmp.lt.s32.totalorder %s691, 7
      %s693 = scalar_select %p692, %s691, 7
      %s694 = smul.addr %s693, 8
      %s695 = scalar_lea.vmem %s2, %s694
      // Predicated region
      $region29: #{tpu_custom_call.1} parent=27 // pred_check
        %p696 = pneg %p78
      $region30: #{tpu_custom_call.1} parent=27 // pred_check_branch
        %698 = sbr.rel (%p696) target = $region32
      $region31: #{tpu_custom_call.1} parent=27 // pred_region
        %s699 = smul.u32 2, %s13
      $region32: #{tpu_custom_call.1} parent=27 // pred_fallthru
        _
    $region28: #{tpu_custom_call.1} parent=5 // pred_fallthru
      _
    %p700 = scmp.le.s32.totalorder 2, %s8
    // Predicated region
    $region33: #{tpu_custom_call.1} parent=5 // pred_check
      %p701 = pneg %p700
    $region34: #{tpu_custom_call.1} parent=5 // pred_check_branch
      %703 = sbr.rel (%p701) target = $region36
    $region35: #{tpu_custom_call.1} parent=5 // pred_region
      %s704 = ssub.s32 %s8, 2
      // Predicated region
      $region37: #{tpu_custom_call.1} parent=35 // pred_check
        %p705 = pneg %p84
      $region38: #{tpu_custom_call.1} parent=35 // pred_check_branch
        %707 = sbr.rel (%p705) target = $region40
      $region39: #{tpu_custom_call.1} parent=35 // pred_region
        %s708 = smul.u32 2, %s14
        %p709 = scmp.lt.s32.totalorder %s708, 7
        %s710 = scalar_select %p709, %s708, 7
        %s711 = smul.addr %s710, 8
        %s712 = scalar_lea.vmem %s2, %s711
      $region40: #{tpu_custom_call.1} parent=35 // pred_fallthru
        _
    $region36: #{tpu_custom_call.1} parent=5 // pred_fallthru
      _
  $region6: #{tpu_custom_call.1} parent=0 // loop_footer
    %s12 = sadd.s32 1, %s8
  $region7: #{tpu_custom_call.1} parent=0 // loop_footer_branch
    %7 = sbr.rel target = $region3
  $region8: #{tpu_custom_call.1} parent=0 // loop_exit
    _

</llo_original>
